<compile_context>
chip_gen: v5e
topology: v5e:2x2
jax: 0.10.0
libtpu: 0.0.40
codegen_flags: <defaults>
</compile_context>

<pallas_src>
import jax
import jax.numpy as jnp
from jax.experimental import pallas as pl
from jax.experimental.pallas import tpu as pltpu

H1 = 128          # linear1 output features
H2 = 64           # linear2 output features
H3 = 1            # linear3 output features (the real output width)
W3_LANES = 128    # W3 zero-padded to 128 output lanes -> MXU-shaped final matmul

MAX_TILE_B = 2048 # rows per grid step for large batches
SUB_B = 512       # rows per in-kernel compute sub-block (bounds vreg live ranges)


def _mlp_rows(x_rows_bf16, w1, b1, w2, b2, w3, b3):
    """Forward for one sub-block of rows. Returns (rows, 1) f32 sigmoid output."""
    # ---- layer 1: x @ W1 + b1, ReLU (bf16 operands, f32 accumulate) ----------
    h1 = jnp.dot(x_rows_bf16, w1, preferred_element_type=jnp.float32)
    h1 = jnp.maximum(h1 + b1, 0.0)

    # ---- dropout(p=0.2): identity in eval/inference mode ---------------------
    # TODO(synk): training-mode dropout (pltpu.prng_random_bits mask) not needed
    # for forward-pass inference semantics.

    # ---- layer 2: h1 @ W2 + b2, ReLU ------------------------------------------
    h2 = jnp.dot(h1.astype(jnp.bfloat16), w2, preferred_element_type=jnp.float32)
    h2 = jnp.maximum(h2 + b2, 0.0)

    # ---- layer 3: h2 @ W3_pad (128 lanes on the MXU), keep only column 0 ------
    z = jnp.dot(h2.astype(jnp.bfloat16), w3, preferred_element_type=jnp.float32)
    z = z[:, :H3]                      # (rows, 1) valid logits
    return jax.nn.sigmoid(z + b3)      # b3 is (1, 1) f32


def mlp_kernel(x_ref, w1_ref, b1_ref, w2_ref, b2_ref, w3_ref, b3_ref, o_ref):
    tile_b = x_ref.shape[0]

    # Resident weights / biases (VMEM, constant index_map -> fetched once).
    w1 = w1_ref[...]
    b1 = b1_ref[...]
    w2 = w2_ref[...]
    b2 = b2_ref[...]
    w3 = w3_ref[...]
    b3 = b3_ref[...]

    sub = min(SUB_B, tile_b)
    n_sub = tile_b // sub              # wrapper guarantees tile_b % sub == 0

    if n_sub == 1:
        # Small tile: straight-line code, cast x to bf16 in-kernel.
        o_ref[...] = _mlp_rows(x_ref[...].astype(jnp.bfloat16),
                               w1, b1, w2, b2, w3, b3)
    else:
        # Big tile: loop over SUB_B-row sub-blocks so f32 intermediates stay
        # bounded in vregs instead of spilling as one giant live range.
        def body(s, carry):
            r0 = pl.multiple_of(s * sub, sub)
            xs = x_ref[pl.ds(r0, sub), :].astype(jnp.bfloat16)
            o_ref[pl.ds(r0, sub), :] = _mlp_rows(xs, w1, b1, w2, b2, w3, b3)
            return carry

        jax.lax.fori_loop(0, n_sub, body, 0)


def _choose_tile_b(batch):
    """Batch tile size: tight tile for small batches, big SUB_B-aligned tiles
    (>= 2 grid steps, so v7x's two TensorCores both get work) for large ones."""
    b8 = ((batch + 7) // 8) * 8        # round up to a sublane multiple
    if b8 <= SUB_B:
        return b8
    half = -(-(b8 // 2) // SUB_B) * SUB_B     # ceil(b8/2) rounded up to SUB_B
    return min(MAX_TILE_B, half)


def pack_params(params):
    """One-time parameter packing (hoisted out of the per-call path):
    bf16 matmul weights, W3 zero-padded to 128 MXU lanes, f32 biases."""
    w1, b1, w2, b2, w3, b3 = params
    w1p = w1.astype(jnp.bfloat16)
    w2p = w2.astype(jnp.bfloat16)
    w3p = jnp.pad(w3, ((0, 0), (0, W3_LANES - w3.shape[1]))).astype(jnp.bfloat16)
    return (w1p, b1, w2p, b2, w3p, b3)


def neural_net_forward(x, packed_params):
    """Fused 3-layer MLP forward. x: [B, D] float32. Returns [B, 1] float32."""
    w1, b1, w2, b2, w3, b3 = packed_params
    B, D = x.shape

    tile_b = _choose_tile_b(B)
    grid = (pl.cdiv(B, tile_b),)       # ragged last block handled by Pallas

    return pl.pallas_call(
        mlp_kernel,
        out_shape=jax.ShapeDtypeStruct((B, H3), jnp.float32),
        grid_spec=pltpu.PrefetchScalarGridSpec(
            num_scalar_prefetch=0,
            grid=grid,
            in_specs=[
                pl.BlockSpec((tile_b, D),      lambda i: (i, 0)),  # x tile (f32, cast in-kernel)
                pl.BlockSpec((D, H1),          lambda i: (0, 0)),  # W1 (resident, bf16)
                pl.BlockSpec((1, H1),          lambda i: (0, 0)),  # b1 (f32)
                pl.BlockSpec((H1, H2),         lambda i: (0, 0)),  # W2 (bf16)
                pl.BlockSpec((1, H2),          lambda i: (0, 0)),  # b2 (f32)
                pl.BlockSpec((H2, W3_LANES),   lambda i: (0, 0)),  # W3 (padded, bf16)
                pl.BlockSpec((1, H3),          lambda i: (0, 0)),  # b3 (f32)
            ],
            out_specs=pl.BlockSpec((tile_b, H3), lambda i: (i, 0)),
        ),
        compiler_params=pltpu.CompilerParams(
            dimension_semantics=("parallel",),  # batch tiles shard across TCs (v7x)
        ),
    )(x, w1, b1, w2, b2, w3, b3)


def init_params(key, input_size):
    """Deterministic init matching nn.Linear shapes (stored as [in, out], f32)."""
    k1, k2, k3, k4, k5, k6 = jax.random.split(key, 6)

    def linear_init(kw, kb, fan_in, fan_out):
        bound = 1.0 / jnp.sqrt(fan_in)
        w = jax.random.uniform(kw, (fan_in, fan_out), jnp.float32, -bound, bound)
        b = jax.random.uniform(kb, (1, fan_out), jnp.float32, -bound, bound)
        return w, b

    w1, b1 = linear_init(k1, k2, input_size, H1)
    w2, b2 = linear_init(k3, k4, H1, H2)
    w3, b3 = linear_init(k5, k6, H2, H3)
    return (w1, b1, w2, b2, w3, b3)


def reference_forward(x, params):
    """Pure-JAX f32 reference for correctness check."""
    w1, b1, w2, b2, w3, b3 = params
    h = jnp.maximum(x @ w1 + b1, 0.0)
    h = jnp.maximum(h @ w2 + b2, 0.0)
    return jax.nn.sigmoid(h @ w3 + b3)


if __name__ == "__main__":
    key = jax.random.PRNGKey(0)
    kx, kp = jax.random.split(key)

    batch, input_size = 8, 32
    x = jax.random.normal(kx, (batch, input_size), dtype=jnp.float32)
    params = init_params(kp, input_size)
    packed = pack_params(params)      # one-time weight packing (bf16 + W3 pad)

    out = neural_net_forward(x, packed)
    out = jax.block_until_ready(out)

    ref = reference_forward(x, params)
    assert out.shape == (batch, 1), out.shape
    # bf16 matmul operands with f32 accumulation: loosened tolerance vs f32 reference
    assert jnp.allclose(out, ref, atol=2e-2, rtol=2e-2), "mismatch vs reference"

    print("KERNEL_OK")
</pallas_src>

<mosaic_0001>
module attributes {stable_mosaic.version = 11 : i64} {
  func.func @mlp_kernel(%arg0: i32, %arg1: memref<8x32xf32, #tpu.memory_space<vmem>>, %arg2: memref<32x128xbf16, #tpu.memory_space<vmem>>, %arg3: memref<1x128xf32, #tpu.memory_space<vmem>>, %arg4: memref<128x64xbf16, #tpu.memory_space<vmem>>, %arg5: memref<1x64xf32, #tpu.memory_space<vmem>>, %arg6: memref<64x128xbf16, #tpu.memory_space<vmem>>, %arg7: memref<1x1xf32, #tpu.memory_space<vmem>>, %arg8: memref<8x1xf32, #tpu.memory_space<vmem>>) attributes {dimension_semantics = [#tpu.dimension_semantics<parallel>], iteration_bounds = array<i64: 1>, scalar_prefetch = 0 : i64, scratch_operands = 0 : i64, tpu.core_type = #tpu.core_type<tc>, window_params = [{transform_indices = @transform_0, window_bounds = array<i64: 8, 32>}, {pipeline_mode = #tpu.pipeline_mode<synchronous>, transform_indices = @transform_1, window_bounds = array<i64: 32, 128>}, {pipeline_mode = #tpu.pipeline_mode<synchronous>, transform_indices = @transform_2, window_bounds = array<i64: 1, 128>}, {pipeline_mode = #tpu.pipeline_mode<synchronous>, transform_indices = @transform_3, window_bounds = array<i64: 128, 64>}, {pipeline_mode = #tpu.pipeline_mode<synchronous>, transform_indices = @transform_4, window_bounds = array<i64: 1, 64>}, {pipeline_mode = #tpu.pipeline_mode<synchronous>, transform_indices = @transform_5, window_bounds = array<i64: 64, 128>}, {pipeline_mode = #tpu.pipeline_mode<synchronous>, transform_indices = @transform_6, window_bounds = array<i64: 1, 1>}, {transform_indices = @transform_7, window_bounds = array<i64: 8, 1>}]} {
    %c0 = arith.constant 0 : index
    %c0_0 = arith.constant 0 : index
    %0 = vector.load %arg2[%c0, %c0_0] : memref<32x128xbf16, #tpu.memory_space<vmem>>, vector<32x128xbf16>
    %c0_1 = arith.constant 0 : index
    %c0_2 = arith.constant 0 : index
    %1 = vector.load %arg3[%c0_1, %c0_2] : memref<1x128xf32, #tpu.memory_space<vmem>>, vector<1x128xf32>
    %c0_3 = arith.constant 0 : index
    %c0_4 = arith.constant 0 : index
    %2 = vector.load %arg4[%c0_3, %c0_4] : memref<128x64xbf16, #tpu.memory_space<vmem>>, vector<128x64xbf16>
    %c0_5 = arith.constant 0 : index
    %c0_6 = arith.constant 0 : index
    %3 = vector.load %arg5[%c0_5, %c0_6] : memref<1x64xf32, #tpu.memory_space<vmem>>, vector<1x64xf32>
    %c0_7 = arith.constant 0 : index
    %c0_8 = arith.constant 0 : index
    %4 = vector.load %arg6[%c0_7, %c0_8] : memref<64x128xbf16, #tpu.memory_space<vmem>>, vector<64x128xbf16>
    %c0_9 = arith.constant 0 : index
    %c0_10 = arith.constant 0 : index
    %5 = vector.load %arg7[%c0_9, %c0_10] : memref<1x1xf32, #tpu.memory_space<vmem>>, vector<1x1xf32>
    %c0_11 = arith.constant 0 : index
    %c0_12 = arith.constant 0 : index
    %6 = vector.load %arg1[%c0_11, %c0_12] : memref<8x32xf32, #tpu.memory_space<vmem>>, vector<8x32xf32>
    %7 = arith.truncf %6 : vector<8x32xf32> to vector<8x32xbf16>
    %cst = arith.constant dense<0.000000e+00> : vector<8x128xf32>
    %8 = tpu.matmul %7, %0, %cst {dimension_numbers = #tpu.dot_dimension_numbers<[1], [0], [0], [1], [0, 0, 1, 1], [], []>} : vector<8x32xbf16>, vector<32x128xbf16>, vector<8x128xf32> -> vector<8x128xf32>
    %9 = vector.broadcast %1 : vector<1x128xf32> to vector<8x128xf32>
    %10 = arith.addf %8, %9 : vector<8x128xf32>
    %cst_13 = arith.constant 0.000000e+00 : f32
    %11 = vector.broadcast %cst_13 : f32 to vector<8x128xf32>
    %12 = arith.maximumf %10, %11 : vector<8x128xf32>
    %13 = arith.truncf %12 : vector<8x128xf32> to vector<8x128xbf16>
    %cst_14 = arith.constant dense<0.000000e+00> : vector<8x64xf32>
    %14 = tpu.matmul %13, %2, %cst_14 {dimension_numbers = #tpu.dot_dimension_numbers<[1], [0], [0], [1], [0, 0, 1, 1], [], []>} : vector<8x128xbf16>, vector<128x64xbf16>, vector<8x64xf32> -> vector<8x64xf32>
    %15 = vector.broadcast %3 : vector<1x64xf32> to vector<8x64xf32>
    %16 = arith.addf %14, %15 : vector<8x64xf32>
    %cst_15 = arith.constant 0.000000e+00 : f32
    %17 = vector.broadcast %cst_15 : f32 to vector<8x64xf32>
    %18 = arith.maximumf %16, %17 : vector<8x64xf32>
    %19 = arith.truncf %18 : vector<8x64xf32> to vector<8x64xbf16>
    %cst_16 = arith.constant dense<0.000000e+00> : vector<8x128xf32>
    %20 = tpu.matmul %19, %4, %cst_16 {dimension_numbers = #tpu.dot_dimension_numbers<[1], [0], [0], [1], [0, 0, 1, 1], [], []>} : vector<8x64xbf16>, vector<64x128xbf16>, vector<8x128xf32> -> vector<8x128xf32>
    %21 = vector.extract_strided_slice %20 {offsets = [0, 0], sizes = [8, 1], strides = [1, 1]} : vector<8x128xf32> to vector<8x1xf32>
    %22 = vector.broadcast %5 : vector<1x1xf32> to vector<8x1xf32>
    %23 = arith.addf %21, %22 : vector<8x1xf32>
    %24 = arith.negf %23 : vector<8x1xf32>
    %25 = math.exp %24 : vector<8x1xf32>
    %cst_17 = arith.constant 1.000000e+00 : f32
    %26 = vector.broadcast %cst_17 : f32 to vector<8x1xf32>
    %27 = arith.addf %26, %25 : vector<8x1xf32>
    %28 = arith.divf %26, %27 : vector<8x1xf32>
    %c0_18 = arith.constant 0 : index
    %c0_19 = arith.constant 0 : index
    %29 = vector.load %arg8[%c0_18, %c0_19] : memref<8x1xf32, #tpu.memory_space<vmem>>, vector<8x1xf32>
    tpu.vector_store %arg8[%c0_18, %c0_19], %28 {strides = array<i32>} : memref<8x1xf32, #tpu.memory_space<vmem>>, vector<8x1xf32>,
    return
  }
  func.func @transform_0(%arg0: i32) -> (i32, i32) {
    %c0_i32 = arith.constant 0 : i32
    %c0_i32_0 = arith.constant 0 : i32
    return %arg0, %c0_i32 : i32, i32
  }
  func.func @transform_1(%arg0: i32) -> (i32, i32) {
    %c0_i32 = arith.constant 0 : i32
    %c0_i32_0 = arith.constant 0 : i32
    %c0_i32_1 = arith.constant 0 : i32
    return %c0_i32, %c0_i32_0 : i32, i32
  }
  func.func @transform_2(%arg0: i32) -> (i32, i32) {
    %c0_i32 = arith.constant 0 : i32
    %c0_i32_0 = arith.constant 0 : i32
    %c0_i32_1 = arith.constant 0 : i32
    return %c0_i32, %c0_i32_0 : i32, i32
  }
  func.func @transform_3(%arg0: i32) -> (i32, i32) {
    %c0_i32 = arith.constant 0 : i32
    %c0_i32_0 = arith.constant 0 : i32
    %c0_i32_1 = arith.constant 0 : i32
    return %c0_i32, %c0_i32_0 : i32, i32
  }
  func.func @transform_4(%arg0: i32) -> (i32, i32) {
    %c0_i32 = arith.constant 0 : i32
    %c0_i32_0 = arith.constant 0 : i32
    %c0_i32_1 = arith.constant 0 : i32
    return %c0_i32, %c0_i32_0 : i32, i32
  }
  func.func @transform_5(%arg0: i32) -> (i32, i32) {
    %c0_i32 = arith.constant 0 : i32
    %c0_i32_0 = arith.constant 0 : i32
    %c0_i32_1 = arith.constant 0 : i32
    return %c0_i32, %c0_i32_0 : i32, i32
  }
  func.func @transform_6(%arg0: i32) -> (i32, i32) {
    %c0_i32 = arith.constant 0 : i32
    %c0_i32_0 = arith.constant 0 : i32
    %c0_i32_1 = arith.constant 0 : i32
    return %c0_i32, %c0_i32_0 : i32, i32
  }
  func.func @transform_7(%arg0: i32) -> (i32, i32) {
    %c0_i32 = arith.constant 0 : i32
    %c0_i32_0 = arith.constant 0 : i32
    return %arg0, %c0_i32 : i32, i32
  }
}

</mosaic_0001>

<llo_original>
// kernel: tpu_custom_call.1
$region0: #{tpu_custom_call.1}
  #allocation0 [shape = 'u32[]', space=smem, size = 0x4, offset = 0x4, fixed_abs, tag = 'smem constant byte address 0x4 - core index']
  #allocation1 [shape = 'u32[72,128]{1,0:T(1,128)}', space=vmem, size = 0x9000, scoped, tag = 'internal scratch']
  #allocation2 [shape = 'f32[1,1]{1,0:T(1,128)S(1)}', space=vmem, size = 0x200, scoped, tag = 'scoped memory for tpu_custom_call.1']
  %s0 = inlined_call_operand.vmem [shape: f32[8,32], index: 0, kind: input, shape index: {}]
  %s1 = inlined_call_operand.vmem [shape: bf16[32,128], index: 1, kind: input, shape index: {}]
  %s2 = inlined_call_operand.vmem [shape: f32[1,128], index: 2, kind: input, shape index: {}]
  %s3 = inlined_call_operand.vmem [shape: bf16[128,64], index: 3, kind: input, shape index: {}]
  %s4 = inlined_call_operand.vmem [shape: f32[1,64], index: 4, kind: input, shape index: {}]
  %s5 = inlined_call_operand.vmem [shape: bf16[64,128], index: 5, kind: input, shape index: {}]
  %s6 = inlined_call_operand.<no memory space> [shape: f32[1,1], index: 6, kind: input, shape index: {}]
  %s7 = inlined_call_operand.vmem [shape: f32[8,1], index: 7, kind: output, shape index: {}]
  %s8 = sld [smem:[#allocation0]]
  $region38: #{tpu_custom_call.1} parent=0
    _
  %s10 = ssub.s32 1, %s8
  %s11 = scalar_select 0, %s10, %s8
  %v12 = vstv %s6
  %13 = vst [vmem:[#allocation2] sm:$0x1] %v12
  // Predicated region
  $region2: #{tpu_custom_call.1} parent=0 // pred_check
    _
  $region3: #{tpu_custom_call.1} parent=0 // pred_check_branch
    %15 = sbr.rel (0) target = $region5
  $region4: #{tpu_custom_call.1} parent=0 // pred_region
    _
  $region5: #{tpu_custom_call.1} parent=0 // pred_fallthru
    _
  // Predicated region
  $region6: #{tpu_custom_call.1} parent=0 // pred_check
    _
  $region7: #{tpu_custom_call.1} parent=0 // pred_check_branch
    %17 = sbr.rel (0) target = $region9
  $region8: #{tpu_custom_call.1} parent=0 // pred_region
    _
  $region9: #{tpu_custom_call.1} parent=0 // pred_fallthru
    _
  // Predicated region
  $region10: #{tpu_custom_call.1} parent=0 // pred_check
    _
  $region11: #{tpu_custom_call.1} parent=0 // pred_check_branch
    %19 = sbr.rel (0) target = $region13
  $region12: #{tpu_custom_call.1} parent=0 // pred_region
    _
  $region13: #{tpu_custom_call.1} parent=0 // pred_fallthru
    _
  // Predicated region
  $region14: #{tpu_custom_call.1} parent=0 // pred_check
    _
  $region15: #{tpu_custom_call.1} parent=0 // pred_check_branch
    %21 = sbr.rel (0) target = $region17
  $region16: #{tpu_custom_call.1} parent=0 // pred_region
    _
  $region17: #{tpu_custom_call.1} parent=0 // pred_fallthru
    _
  // Predicated region
  $region18: #{tpu_custom_call.1} parent=0 // pred_check
    _
  $region19: #{tpu_custom_call.1} parent=0 // pred_check_branch
    %23 = sbr.rel (0) target = $region21
  $region20: #{tpu_custom_call.1} parent=0 // pred_region
    _
  $region21: #{tpu_custom_call.1} parent=0 // pred_fallthru
    _
  // Predicated region
  $region22: #{tpu_custom_call.1} parent=0 // pred_check
    _
  $region23: #{tpu_custom_call.1} parent=0 // pred_check_branch
    %25 = sbr.rel (0) target = $region25
  $region24: #{tpu_custom_call.1} parent=0 // pred_region
    _
  $region25: #{tpu_custom_call.1} parent=0 // pred_fallthru
    _
  // Predicated region
  $region26: #{tpu_custom_call.1} parent=0 // pred_check
    _
  $region27: #{tpu_custom_call.1} parent=0 // pred_check_branch
    %27 = sbr.rel (0) target = $region29
  $region28: #{tpu_custom_call.1} parent=0 // pred_region
    _
  $region29: #{tpu_custom_call.1} parent=0 // pred_fallthru
    _
  %v29 = vld [vmem:[%s1] sm:$0xf]
  %v30 = vld [vmem:[%s1 + $0x4] sm:$0xf]
  %v31 = vld [vmem:[%s1 + $0x8] sm:$0xf]
  %v32 = vld [vmem:[%s1 + $0xc] sm:$0xf]
  %v33 = vld [vmem:[%s2] sm:$0x1]
  %v34 = vld [vmem:[%s3] sm:$0xf]
  %v35 = vld [vmem:[%s3 + $0x4] sm:$0xf]
  %v36 = vld [vmem:[%s3 + $0x8] sm:$0xf]
  %v37 = vld [vmem:[%s3 + $0xc] sm:$0xf]
  %v38 = vld [vmem:[%s3 + $0x10] sm:$0xf]
  %v39 = vld [vmem:[%s3 + $0x14] sm:$0xf]
  %v40 = vld [vmem:[%s3 + $0x18] sm:$0xf]
  %v41 = vld [vmem:[%s3 + $0x1c] sm:$0xf]
  %v42 = vld [vmem:[%s3 + $0x20] sm:$0xf]
  %v43 = vld [vmem:[%s3 + $0x24] sm:$0xf]
  %v44 = vld [vmem:[%s3 + $0x28] sm:$0xf]
  %v45 = vld [vmem:[%s3 + $0x2c] sm:$0xf]
  %v46 = vld [vmem:[%s3 + $0x30] sm:$0xf]
  %v47 = vld [vmem:[%s3 + $0x34] sm:$0xf]
  %v48 = vld [vmem:[%s3 + $0x38] sm:$0xf]
  %v49 = vld [vmem:[%s3 + $0x3c] sm:$0xf]
  %v50 = vld [vmem:[%s4] sm:$0x1]
  %v51 = vld [vmem:[%s5] sm:$0xf]
  %v52 = vld [vmem:[%s5 + $0x4] sm:$0xf]
  %v53 = vld [vmem:[%s5 + $0x8] sm:$0xf]
  %v54 = vld [vmem:[%s5 + $0xc] sm:$0xf]
  %v55 = vld [vmem:[%s5 + $0x10] sm:$0xf]
  %v56 = vld [vmem:[%s5 + $0x14] sm:$0xf]
  %v57 = vld [vmem:[%s5 + $0x18] sm:$0xf]
  %v58 = vld [vmem:[%s5 + $0x1c] sm:$0xf]
  %v59 = vld [vmem:[#allocation2] sm:$0x1]
  %v60 = vld [vmem:[%s0] sm:$0xff]
  %v61 = vpack.c.bf16 %v60, %v60
  %v63 = vperm.slane %v33, 0
  %v69 = vunpack.c.l.b16 %v29
  %v70 = vunpack.c.l.b16 %v30
  %v71 = vunpack.c.l.b16 %v31
  %v72 = vunpack.c.l.b16 %v32
  %v73 = vpack.c.b16 %v70, %v69
  %v74 = vpack.c.b16 %v72, %v71
  %vm77 = vcmask 261120
  %v79 = vsel %vm77, %v61, 0
  %81 = vmatpush.bf16.msra.mxu0 0
  %82 = vmatpush.bf16.msra.mxu0 0
  %83 = vmatpush.bf16.msra.mxu0 0
  %84 = vmatpush.bf16.msra.mxu0 0
  %85 = vmatpush.bf16.msra.mxu0 0
  %86 = vmatpush.bf16.msra.mxu0 0
  %87 = vmatpush.bf16.msra.mxu0 %v74
  %88 = vmatpush.bf16.msra.mxu0 %v73
  %89 = vmatmul.bf16.gmra.mxu0 %v79
  %v90 = vpop.f32.mrf.mxu0
  %v91 = vadd.f32 %v63, %v90
  %v92 = vpop.f32.mrf.mxu0
  %93 = vdwg.mxu0
  %v94 = vmax.f32 %v91, 0.0
  %v95 = vpack.c.bf16 %v94, %v94
  %v97 = vperm.slane %v50, 0
  %v115 = vunpack.c.l.b16 %v34
  %v116 = vunpack.c.l.b16 %v35
  %v117 = vunpack.c.l.b16 %v36
  %v118 = vunpack.c.l.b16 %v37
  %v119 = vunpack.c.l.b16 %v38
  %v120 = vunpack.c.l.b16 %v39
  %v121 = vunpack.c.l.b16 %v40
  %v122 = vunpack.c.l.b16 %v41
  %v123 = vunpack.c.l.b16 %v42
  %v124 = vunpack.c.l.b16 %v43
  %v125 = vunpack.c.l.b16 %v44
  %v126 = vunpack.c.l.b16 %v45
  %v127 = vunpack.c.l.b16 %v46
  %v128 = vunpack.c.l.b16 %v47
  %v129 = vunpack.c.l.b16 %v48
  %v130 = vunpack.c.l.b16 %v49
  %v131 = vpack.c.b16 %v116, %v115
  %v132 = vpack.c.b16 %v118, %v117
  %v133 = vpack.c.b16 %v120, %v119
  %v134 = vpack.c.b16 %v122, %v121
  %v135 = vpack.c.b16 %v124, %v123
  %v136 = vpack.c.b16 %v126, %v125
  %v137 = vpack.c.b16 %v128, %v127
  %v138 = vpack.c.b16 %v130, %v129
  %147 = vmatpush.bf16.msra.mxu0 %v138
  %148 = vmatpush.bf16.msra.mxu0 %v137
  %149 = vmatpush.bf16.msra.mxu0 %v136
  %150 = vmatpush.bf16.msra.mxu0 %v135
  %151 = vmatpush.bf16.msra.mxu0 %v134
  %152 = vmatpush.bf16.msra.mxu0 %v133
  %153 = vmatpush.bf16.msra.mxu0 %v132
  %154 = vmatpush.bf16.msra.mxu0 %v131
  %155 = vmatmul.bf16.gmra.mxu0 %v95
  %v156 = vpop.f32.mrf.mxu0
  %v157 = vadd.f32 %v97, %v156
  %v158 = vpop.f32.mrf.mxu0
  %159 = vdwg.mxu0
  %v160 = vmax.f32 %v157, 0.0
  %v161 = vpack.c.bf16 %v160, %v160
  %v170 = vunpack.c.l.b16 %v51
  %v171 = vunpack.c.l.b16 %v52
  %v172 = vunpack.c.l.b16 %v53
  %v173 = vunpack.c.l.b16 %v54
  %v174 = vunpack.c.l.b16 %v55
  %v175 = vunpack.c.l.b16 %v56
  %v176 = vunpack.c.l.b16 %v57
  %v177 = vunpack.c.l.b16 %v58
  %v178 = vpack.c.b16 %v171, %v170
  %v179 = vpack.c.b16 %v173, %v172
  %v180 = vpack.c.b16 %v175, %v174
  %v181 = vpack.c.b16 %v177, %v176
  %vm186 = vcmask 523264
  %v188 = vsel %vm186, %v161, 0
  %190 = vmatpush.bf16.msra.mxu0 0
  %191 = vmatpush.bf16.msra.mxu0 0
  %192 = vmatpush.bf16.msra.mxu0 0
  %193 = vmatpush.bf16.msra.mxu0 0
  %194 = vmatpush.bf16.msra.mxu0 %v181
  %195 = vmatpush.bf16.msra.mxu0 %v180
  %196 = vmatpush.bf16.msra.mxu0 %v179
  %197 = vmatpush.bf16.msra.mxu0 %v178
  %198 = vmatmul.bf16.gmra.mxu0 %v188
  %v199 = vpop.f32.mrf.mxu0
  %v200 = vadd.f32 0.0, %v199
  %v201 = vpop.f32.mrf.mxu0
  %202 = vdwg.mxu0
  %v204 = vperm.slane %v59, 0
  %v206 = vadd.f32 %v200, %v204
  %v207 = vxor.u32 %v206, 2147483648
  %v208 = vmul.f32 %v207, 1.442695
  %v209 = vpow.pop %v208
  %v210 = vadd.f32 %v209, 1.0
  %v211 = vrcp.pop %v210
  %v212 = vmul.f32 %v210, %v211
  %v213 = vsub.f32 1.0, %v212
  %v214 = vmul.f32 %v211, %v213
  %v215 = vadd.f32 %v211, %v214
  %vm216 = vweird.f32 %v210
  %vm217 = vweird.f32 %v211
  %vm218 = vmor %vm216, %vm217
  %v219 = vsel %vm218, %v211, %v215
  %v220 = vand.u32 2147483647, %v210
  %vm221 = vcmp.eq.f32.partialorder %v220, 8.507059e+37
  %v222 = vand.u32 %v210, 2147483648
  %v223 = vor.u32 1.1754944e-38, %v222
  %v224 = vsel %vm221, %v223, %v219
  %v225 = vmul.f32 1.0, %v224
  %vm226 = vcmask 7168
  %227 = vst.msk [vmem:[%s7] sm:$0xff] %vm226, %v225
  // Predicated region
  $region30: #{tpu_custom_call.1} parent=0 // pred_check
    _
  $region31: #{tpu_custom_call.1} parent=0 // pred_check_branch
    %229 = sbr.rel (0) target = $region33
  $region32: #{tpu_custom_call.1} parent=0 // pred_region
    _
  $region33: #{tpu_custom_call.1} parent=0 // pred_fallthru
    _
  // Predicated region
  $region34: #{tpu_custom_call.1} parent=0 // pred_check
    _
  $region35: #{tpu_custom_call.1} parent=0 // pred_check_branch
    %231 = sbr.rel (0) target = $region37
  $region36: #{tpu_custom_call.1} parent=0 // pred_region
    _
  $region37: #{tpu_custom_call.1} parent=0 // pred_fallthru
    _

</llo_original>
